<compile_context>
chip_gen: v7x
topology: tpu7x:2x2x1
jax: 0.10.0
libtpu: 0.0.40
codegen_flags: <defaults>
</compile_context>

<pallas_src>
import functools

import jax
import jax.numpy as jnp
from jax.experimental import pallas as pl
from jax.experimental.pallas import tpu as pltpu

IN_FEATURES = 110


def dst_kernel(x_ref, w_ref, b_ref, o_ref):
    # x: (110, TB)  -- batch on the lane axis
    # w: (nA, 110)  -- PyTorch Linear weight layout (out, in), used directly
    # b: (nA, 1)
    # o: (nA, TB)
    z = jnp.dot(w_ref[...], x_ref[...], preferred_element_type=jnp.float32)
    z = z + b_ref[...]                       # broadcast over lanes
    o_ref[...] = jax.nn.sigmoid(z).astype(o_ref.dtype)


@functools.partial(jax.jit, static_argnames=("tb",))
def dst_forward(state, params, *, tb=1024):
    """state: (B, 110) (extra dims flattened). Returns (B, nA) float32."""
    assert tb % 128 == 0, "batch tile must be a multiple of the 128-lane width"
    B = state.shape[0]
    x = state.reshape(B, -1).astype(jnp.float32)     # state.float()
    assert x.shape[1] == IN_FEATURES, f"expected {IN_FEATURES} features, got {x.shape[1]}"

    w, b = params["w"], params["b"]                  # (nA, 110), (nA, 1)
    nA = w.shape[0]

    # Transposed layout: batch -> lane axis; pad batch to a lane-aligned tile.
    TB = min(tb, pl.cdiv(B, 128) * 128)              # tile size (multiple of 128)
    B_pad = pl.cdiv(B, TB) * TB
    xT = jnp.pad(x.T, ((0, 0), (0, B_pad - B)))      # (110, B_pad)

    grid = (B_pad // TB,)

    cost = pl.CostEstimate(
        flops=2 * B_pad * IN_FEATURES * nA,
        transcendentals=B_pad * nA,                  # sigmoid -> exp on EUP
        bytes_accessed=4 * (B_pad * IN_FEATURES + B_pad * nA
                            + IN_FEATURES * nA + nA),
    )

    outT = pl.pallas_call(
        dst_kernel,
        out_shape=jax.ShapeDtypeStruct((nA, B_pad), jnp.float32),
        grid_spec=pltpu.PrefetchScalarGridSpec(
            num_scalar_prefetch=0,
            grid=grid,
            in_specs=[
                pl.BlockSpec((IN_FEATURES, TB), lambda i: (0, i)),  # activations: tiled over batch
                pl.BlockSpec((nA, IN_FEATURES), lambda i: (0, 0)),  # weights: resident
                pl.BlockSpec((nA, 1), lambda i: (0, 0)),            # bias: resident
            ],
            out_specs=pl.BlockSpec((nA, TB), lambda i: (0, i)),
        ),
        compiler_params=pltpu.CompilerParams(
            dimension_semantics=("parallel",),       # v7x: shard batch tiles across 2 TCs
        ),
        cost_estimate=cost,
    )(xT, w, b)

    # Transpose back + drop batch padding (cheap wrapper-side layout plumbing).
    return outT[:, :B].T


def init_params(key, nA, n_hidden_unused=64):
    # nn.Linear default init: U(-1/sqrt(fan_in), 1/sqrt(fan_in)), fan_in = 110.
    # (n_hidden is unused by DSTModel, mirrored here for parity with the spec.)
    k1, k2 = jax.random.split(key, 2)
    lim = 1.0 / jnp.sqrt(float(IN_FEATURES))
    return {
        "w": jax.random.uniform(k1, (nA, IN_FEATURES), jnp.float32, -lim, lim),
        "b": jax.random.uniform(k2, (nA, 1), jnp.float32, -lim, lim),
    }


if __name__ == "__main__":
    key = jax.random.PRNGKey(0)
    k_in, k_par = jax.random.split(key)

    B, nA = 2, 4
    # Deep-Sea-Treasure style one-hot-ish state vector of length 110.
    state = jax.random.uniform(k_in, (B, IN_FEATURES), jnp.float32, 0.0, 1.0)

    params = init_params(k_par, nA)

    out = dst_forward(state, params)
    out = jax.block_until_ready(out)

    # Reference in plain JAX (same math as the PyTorch module).
    ref = jax.nn.sigmoid(state.astype(jnp.float32) @ params["w"].T
                         + params["b"][:, 0])
    assert out.shape == (B, nA), out.shape
    assert jnp.allclose(out, ref, atol=1e-5, rtol=1e-5), float(jnp.max(jnp.abs(out - ref)))

    print("KERNEL_OK")
</pallas_src>

<mosaic_0001>
module attributes {stable_mosaic.version = 11 : i64} {
  func.func @dst_kernel(%arg0: i32, %arg1: memref<110x128xf32, #tpu.memory_space<vmem>>, %arg2: memref<4x110xf32, #tpu.memory_space<vmem>>, %arg3: memref<4x1xf32, #tpu.memory_space<vmem>>, %arg4: memref<4x128xf32, #tpu.memory_space<vmem>>) attributes {dimension_semantics = [#tpu.dimension_semantics<parallel>], iteration_bounds = array<i64: 1>, scalar_prefetch = 0 : i64, scratch_operands = 0 : i64, tpu.core_type = #tpu.core_type<tc>, window_params = [{transform_indices = @transform_0, window_bounds = array<i64: 110, 128>}, {pipeline_mode = #tpu.pipeline_mode<synchronous>, transform_indices = @transform_1, window_bounds = array<i64: 4, 110>}, {pipeline_mode = #tpu.pipeline_mode<synchronous>, transform_indices = @transform_2, window_bounds = array<i64: 4, 1>}, {transform_indices = @transform_3, window_bounds = array<i64: 4, 128>}]} {
    %c0 = arith.constant 0 : index
    %c0_0 = arith.constant 0 : index
    %0 = vector.load %arg2[%c0, %c0_0] : memref<4x110xf32, #tpu.memory_space<vmem>>, vector<4x110xf32>
    %c0_1 = arith.constant 0 : index
    %c0_2 = arith.constant 0 : index
    %1 = vector.load %arg1[%c0_1, %c0_2] : memref<110x128xf32, #tpu.memory_space<vmem>>, vector<110x128xf32>
    %cst = arith.constant dense<0.000000e+00> : vector<4x128xf32>
    %2 = tpu.matmul %0, %1, %cst {dimension_numbers = #tpu.dot_dimension_numbers<[1], [0], [0], [1], [0, 0, 1, 1], [], []>} : vector<4x110xf32>, vector<110x128xf32>, vector<4x128xf32> -> vector<4x128xf32>
    %c0_3 = arith.constant 0 : index
    %c0_4 = arith.constant 0 : index
    %3 = vector.load %arg3[%c0_3, %c0_4] : memref<4x1xf32, #tpu.memory_space<vmem>>, vector<4x1xf32>
    %4 = vector.broadcast %3 : vector<4x1xf32> to vector<4x128xf32>
    %5 = arith.addf %2, %4 : vector<4x128xf32>
    %6 = arith.negf %5 : vector<4x128xf32>
    %7 = math.exp %6 : vector<4x128xf32>
    %cst_5 = arith.constant 1.000000e+00 : f32
    %8 = vector.broadcast %cst_5 : f32 to vector<4x128xf32>
    %9 = arith.addf %8, %7 : vector<4x128xf32>
    %10 = arith.divf %8, %9 : vector<4x128xf32>
    %c0_6 = arith.constant 0 : index
    %c0_7 = arith.constant 0 : index
    %11 = vector.load %arg4[%c0_6, %c0_7] : memref<4x128xf32, #tpu.memory_space<vmem>>, vector<4x128xf32>
    tpu.vector_store %arg4[%c0_6, %c0_7], %10 {strides = array<i32>} : memref<4x128xf32, #tpu.memory_space<vmem>>, vector<4x128xf32>,
    return
  }
  func.func @transform_0(%arg0: i32) -> (i32, i32) {
    %c0_i32 = arith.constant 0 : i32
    %c0_i32_0 = arith.constant 0 : i32
    return %c0_i32, %arg0 : i32, i32
  }
  func.func @transform_1(%arg0: i32) -> (i32, i32) {
    %c0_i32 = arith.constant 0 : i32
    %c0_i32_0 = arith.constant 0 : i32
    %c0_i32_1 = arith.constant 0 : i32
    return %c0_i32, %c0_i32_0 : i32, i32
  }
  func.func @transform_2(%arg0: i32) -> (i32, i32) {
    %c0_i32 = arith.constant 0 : i32
    %c0_i32_0 = arith.constant 0 : i32
    %c0_i32_1 = arith.constant 0 : i32
    return %c0_i32, %c0_i32_0 : i32, i32
  }
  func.func @transform_3(%arg0: i32) -> (i32, i32) {
    %c0_i32 = arith.constant 0 : i32
    %c0_i32_0 = arith.constant 0 : i32
    return %c0_i32, %arg0 : i32, i32
  }
}

</mosaic_0001>

<llo_original>
// kernel: dst_forward.1
$region0: #{dst_forward.1}
  #allocation0 [shape = 'u32[]', space=smem, size = 0x4, offset = 0x4, fixed_abs, tag = 'smem constant byte address 0x4 - core index']
  #allocation1 [shape = 'u32[144,128]{1,0:T(1,128)}', space=vmem, size = 0x12000, scoped, tag = 'internal scratch']
  %s0 = inlined_call_operand.vmem [shape: f32[110,128], index: 0, kind: input, shape index: {}]
  %s1 = inlined_call_operand.vmem [shape: f32[4,110], index: 1, kind: input, shape index: {}]
  %s2 = inlined_call_operand.vmem [shape: f32[4,1], index: 2, kind: input, shape index: {}]
  %s3 = inlined_call_operand.vmem [shape: f32[4,128], index: 3, kind: output, shape index: {}]
  %s4 = sld [smem:[#allocation0]]
  $region22: #{dst_forward.1} parent=0
    _
  %s6 = ssub.s32 1, %s4
  %s7 = scalar_select 0, %s6, %s4
  // Predicated region
  $region2: #{dst_forward.1} parent=0 // pred_check
    _
  $region3: #{dst_forward.1} parent=0 // pred_check_branch
    %9 = sbr.rel (0) target = $region5
  $region4: #{dst_forward.1} parent=0 // pred_region
    _
  $region5: #{dst_forward.1} parent=0 // pred_fallthru
    _
  // Predicated region
  $region6: #{dst_forward.1} parent=0 // pred_check
    _
  $region7: #{dst_forward.1} parent=0 // pred_check_branch
    %11 = sbr.rel (0) target = $region9
  $region8: #{dst_forward.1} parent=0 // pred_region
    _
  $region9: #{dst_forward.1} parent=0 // pred_fallthru
    _
  // Predicated region
  $region10: #{dst_forward.1} parent=0 // pred_check
    _
  $region11: #{dst_forward.1} parent=0 // pred_check_branch
    %13 = sbr.rel (0) target = $region13
  $region12: #{dst_forward.1} parent=0 // pred_region
    _
  $region13: #{dst_forward.1} parent=0 // pred_fallthru
    _
  %v14 = vld [vmem:[%s1] sm:$0xf]
  %v15 = vld [vmem:[%s0] sm:$0xff]
  %v16 = vld [vmem:[%s0 + $0x8] sm:$0xff]
  %v17 = vld [vmem:[%s0 + $0x10] sm:$0xff]
  %v18 = vld [vmem:[%s0 + $0x18] sm:$0xff]
  %v19 = vld [vmem:[%s0 + $0x20] sm:$0xff]
  %v20 = vld [vmem:[%s0 + $0x28] sm:$0xff]
  %v21 = vld [vmem:[%s0 + $0x30] sm:$0xff]
  %v22 = vld [vmem:[%s0 + $0x38] sm:$0xff]
  %v23 = vld [vmem:[%s0 + $0x40] sm:$0xff]
  %v24 = vld [vmem:[%s0 + $0x48] sm:$0xff]
  %v25 = vld [vmem:[%s0 + $0x50] sm:$0xff]
  %v26 = vld [vmem:[%s0 + $0x58] sm:$0xff]
  %v27 = vld [vmem:[%s0 + $0x60] sm:$0xff]
  %v28 = vld [vmem:[%s0 + $0x68] sm:$0x3f]
  %v29 = vld [vmem:[%s2] sm:$0xf]
  %31 = vset.pattern.permute.xlu0 0
  %32 = vperm.xlu0 %31, %v29
  %v33 = vpop.permute.xlu0 %32
  %vm35 = vcmask 900096
  %v37 = vsel %vm35, %v14, 0
  %vm39 = vcmask 1045504
  %v41 = vsel %vm39, %v28, 0
  %43 = vmatprep.subr.mxu0 0.0
  %44 = vmatpush1.msra.mxu0 %v15
  %45 = vmatprep.subr.mxu0 0.0
  %46 = vmatpush1.msra.mxu0 %v16
  %47 = vmatprep.subr.mxu0 0.0
  %48 = vmatpush1.msra.mxu0 %v17
  %49 = vmatprep.subr.mxu0 0.0
  %50 = vmatpush1.msra.mxu0 %v18
  %51 = vmatprep.subr.mxu0 0.0
  %52 = vmatpush1.msra.mxu0 %v19
  %53 = vmatprep.subr.mxu0 0.0
  %54 = vmatpush1.msra.mxu0 %v20
  %55 = vmatprep.subr.mxu0 0.0
  %56 = vmatpush1.msra.mxu0 %v21
  %57 = vmatprep.subr.mxu0 0.0
  %58 = vmatpush1.msra.mxu0 %v22
  %59 = vmatprep.subr.mxu0 0.0
  %60 = vmatpush1.msra.mxu0 %v23
  %61 = vmatprep.subr.mxu0 0.0
  %62 = vmatpush1.msra.mxu0 %v24
  %63 = vmatprep.subr.mxu0 0.0
  %64 = vmatpush1.msra.mxu0 %v25
  %65 = vmatprep.subr.mxu0 0.0
  %66 = vmatpush1.msra.mxu0 %v26
  %67 = vmatprep.subr.mxu0 0.0
  %68 = vmatpush1.msra.mxu0 %v27
  %69 = vmatprep.subr.mxu0 0.0
  %70 = vmatpush1.msra.mxu0 %v41
  %71 = vmatprep.subr.mxu0 0.0
  %72 = vmatpush1.msra.mxu0 0.0
  %73 = vmatprep.subr.mxu0 0.0
  %74 = vmatpush1.msra.mxu0 0.0
  %75 = vmatprep.subr.mxu0 0.0
  %76 = vmatpush1.msra.mxu0 0.0
  %77 = vmatprep.subr.mxu0 0.0
  %78 = vmatpush1.msra.mxu0 0.0
  %79 = vmatprep.subr.mxu0 0.0
  %80 = vmatpush1.msra.mxu0 0.0
  %81 = vmatprep.subr.mxu0 0.0
  %82 = vmatpush1.msra.mxu0 0.0
  %83 = vmatprep.subr.mxu0 0.0
  %84 = vmatpush1.msra.mxu0 0.0
  %85 = vmatprep.subr.mxu0 0.0
  %86 = vmatpush1.msra.mxu0 0.0
  %87 = vmatprep.subr.mxu0 0.0
  %88 = vmatpush1.msra.mxu0 0.0
  %89 = vmatprep.subr.mxu0 0.0
  %90 = vmatpush1.msra.mxu0 0.0
  %91 = vmatprep.subr.mxu0 0.0
  %92 = vmatpush1.msra.mxu0 0.0
  %93 = vmatprep.subr.mxu0 0.0
  %94 = vmatpush1.msra.mxu0 0.0
  %95 = vmatprep.subr.mxu0 0.0
  %96 = vmatpush1.msra.mxu0 0.0
  %97 = vmatprep.subr.mxu0 0.0
  %98 = vmatpush1.msra.mxu0 0.0
  %99 = vmatprep.subr.mxu0 0.0
  %100 = vmatpush1.msra.mxu0 0.0
  %101 = vmatprep.subr.mxu0 0.0
  %102 = vmatpush1.msra.mxu0 0.0
  %103 = vmatprep.subr.mxu0 0.0
  %104 = vmatpush1.msra.mxu0 0.0
  %105 = vmatprep.subr.mxu0 0.0
  %106 = vmatpush1.msra.mxu0 0.0
  %107 = vmatprep.mubr.f32.mxu0 0.0
  %108 = vmatmul.mubr.f32.gmra.mrb[0].mxu0 %v37
  %v109 = vpop.f32.mrb[0].mxu0
  %v110 = vadd.f32 %v33, %v109
  %v111 = vpop.f32.mrb[0].mxu0
  %112 = vdwg.mxu0
  %v113 = vxor.u32 %v110, 2147483648
  %v114 = vmul.f32 %v113, 1.442695
  %v115 = vpow.pop %v114
  %v116 = vadd.f32 %v115, 1.0
  %v117 = vrcp.pop %v116
  %v118 = vmul.f32 1.0, %v117
  %119 = vst [vmem:[%s3] sm:$0xf] %v118
  // Predicated region
  $region14: #{dst_forward.1} parent=0 // pred_check
    _
  $region15: #{dst_forward.1} parent=0 // pred_check_branch
    %121 = sbr.rel (0) target = $region17
  $region16: #{dst_forward.1} parent=0 // pred_region
    _
  $region17: #{dst_forward.1} parent=0 // pred_fallthru
    _
  // Predicated region
  $region18: #{dst_forward.1} parent=0 // pred_check
    _
  $region19: #{dst_forward.1} parent=0 // pred_check_branch
    %123 = sbr.rel (0) target = $region21
  $region20: #{dst_forward.1} parent=0 // pred_region
    _
  $region21: #{dst_forward.1} parent=0 // pred_fallthru
    _

</llo_original>
